<compile_context>
chip_gen: v5e
topology: v5e:2x2
jax: 0.10.0
libtpu: 0.0.40
codegen_flags: <defaults>
</compile_context>

<pallas_src>
import jax
import jax.numpy as jnp
import numpy as np
from jax.experimental import pallas as pl
from jax.experimental.pallas import tpu as pltpu

# ---------------- static problem sizes ----------------
B, N = 2, 16                 # num_graphs, nodes-per-graph == num_features
F = N                        # node feature dim
HC = 8                       # hidden_channels
L = 2                        # num_layers (kernel hard-codes 2 GCN layers)
HIDDEN = 32                  # mlp hidden
NUM_CLASSES = 2
C_PAD = 128                  # lane-dense padded class dim for the output store
TRIU = N * (N - 1) // 2      # input_dim  = n*n/2 - n/2
EPS = 1e-5

LANE = 128
SUB = 8

# ---------------- packed parameter slab layout (static) ----------------
PARAM_SHAPES = (
    ("w1",   (F, HC)),              # GCN layer-1 weight
    ("b1",   (1, HC)),              # GCN layer-1 bias
    ("w2",   (HC, HC)),             # GCN layer-2 weight
    ("b2",   (1, HC)),              # GCN layer-2 bias
    ("pool", (B, B * N)),           # per-graph mean-pooling matrix
    ("w1a",  (N * N, HIDDEN)),      # triu-gather + bn + BN(hidden) folded first-MLP weight
    ("w1b",  (L * HC, HIDDEN)),     # pooled-feature half of first-MLP weight (bnh folded)
    ("bm1",  (1, HIDDEN)),          # folded first-MLP bias
    ("wm2",  (HIDDEN, HIDDEN // 2)),
    ("bm2",  (1, HIDDEN // 2)),
    ("wm3",  (HIDDEN // 2, HIDDEN // 2)),
    ("bm3",  (1, HIDDEN // 2)),
    ("wm4",  (HIDDEN // 2, C_PAD)),  # padded: zeros beyond NUM_CLASSES
    ("bm4",  (1, C_PAD)),            # padded: -1e9 beyond NUM_CLASSES
)
PARAM_DICT = dict(PARAM_SHAPES)


def _pad_rows(r):
    return ((r + SUB - 1) // SUB) * SUB


OFFSETS = {}
_r = 0
for _name, (_rows, _cols) in PARAM_SHAPES:
    OFFSETS[_name] = _r
    _r += _pad_rows(_rows)
SLAB_ROWS = _r               # 416 rows * 128 lanes * 4 B ~= 208 KiB << VMEM


def pack_params(pdict):
    slab = np.zeros((SLAB_ROWS, LANE), np.float32)
    for name, (rows, cols) in PARAM_SHAPES:
        a = np.asarray(pdict[name], np.float32)
        assert a.shape == (rows, cols), (name, a.shape, (rows, cols))
        r0 = OFFSETS[name]
        slab[r0:r0 + rows, :cols] = a
    return jnp.asarray(slab)


# -------- single fused Pallas kernel: GCN x2 + pooling + folded MLP + LogSoftmax --------
def fused_kernel(adj_ref, xs_ref, xf_ref, slab_ref, out_ref):
    def p(name):
        rows, cols = PARAM_DICT[name]
        r0 = OFFSETS[name]
        return slab_ref[r0:r0 + rows, :cols]          # static slice of the packed slab

    adj = adj_ref[...]                                 # (B*N, B*N) block-diag normalized adjacency

    # ---- GCN layer 1: tanh(A_blk @ (X @ W1) + b1), one dot per stage
    xw = jnp.dot(xs_ref[...], p("w1"), preferred_element_type=jnp.float32)    # (B*N, HC)
    h1 = jnp.tanh(jnp.dot(adj, xw, preferred_element_type=jnp.float32) + p("b1"))

    # ---- GCN layer 2
    hw = jnp.dot(h1, p("w2"), preferred_element_type=jnp.float32)             # (B*N, HC)
    h2 = jnp.tanh(jnp.dot(adj, hw, preferred_element_type=jnp.float32) + p("b2"))

    # ---- MeanAggregation of both layers in a single pooling matmul
    m = jnp.dot(p("pool"), jnp.concatenate([h1, h2], axis=1),
                preferred_element_type=jnp.float32)                           # (B, 2*HC)

    # ---- MLP layer 1: triu gather + bn/bnh + BatchNorm(hidden) folded into weights
    z = (jnp.dot(xf_ref[...], p("w1a"), preferred_element_type=jnp.float32)   # (B, HIDDEN)
         + jnp.dot(m, p("w1b"), preferred_element_type=jnp.float32)
         + p("bm1"))
    h = jnp.maximum(z, 0.0)                            # ReLU (Dropout = identity in eval)
    h = jnp.maximum(jnp.dot(h, p("wm2"), preferred_element_type=jnp.float32) + p("bm2"), 0.0)
    h = jnp.maximum(jnp.dot(h, p("wm3"), preferred_element_type=jnp.float32) + p("bm3"), 0.0)
    logits = jnp.dot(h, p("wm4"), preferred_element_type=jnp.float32) + p("bm4")  # (B, C_PAD)

    # ---- LogSoftmax(dim=1): padded classes sit at -1e9 -> exp underflows to 0
    mx = jnp.max(logits, axis=1, keepdims=True)
    zz = logits - mx
    lse = jnp.log(jnp.sum(jnp.exp(zz), axis=1, keepdims=True))
    out_ref[...] = zz - lse                            # lane-dense (B, 128) store


def fused_forward(adj_blk, x_stack, x_flat, slab):
    vmem = pl.BlockSpec(memory_space=pltpu.MemorySpace.VMEM)
    out = pl.pallas_call(
        fused_kernel,
        out_shape=jax.ShapeDtypeStruct((B, C_PAD), jnp.float32),
        in_specs=[vmem, vmem, vmem, vmem],
        out_specs=vmem,
        compiler_params=pltpu.CompilerParams(vmem_limit_bytes=32 << 20),
    )(adj_blk, x_stack, x_flat, slab)
    return out[:, :NUM_CLASSES]


# -------- deterministic parameter init (shapes from ResidualGNNs.__init__) --------
def bn_affine(key, dim):
    kg, kb = jax.random.split(key)
    gamma = 1.0 + 0.1 * jax.random.normal(kg, (1, dim), jnp.float32)
    beta = 0.1 * jax.random.normal(kb, (1, dim), jnp.float32)
    run_mean = jnp.zeros((1, dim), jnp.float32)
    run_var = jnp.ones((1, dim), jnp.float32)
    scale = gamma / jnp.sqrt(run_var + EPS)
    shift = beta - run_mean * scale
    return scale, shift


def linear(key, din, dout):
    kw, kb = jax.random.split(key)
    w = 0.1 * jax.random.normal(kw, (din, dout), jnp.float32)
    b = 0.1 * jax.random.normal(kb, (1, dout), jnp.float32)
    return w, b


if __name__ == "__main__":
    root = jax.random.PRNGKey(0)
    keys = jax.random.split(root, 12)

    # synthetic connectome-style input: symmetric positive weights, zero diagonal
    wgt = jax.random.uniform(keys[0], (B, N, N), jnp.float32, 0.1, 1.0)
    wgt = 0.5 * (wgt + jnp.swapaxes(wgt, 1, 2))
    eye = jnp.eye(N, dtype=jnp.float32)
    x_nodes = wgt * (1.0 - eye)                              # (B, N, N) node features
    # binary edge structure (edge_index equivalent) + GCN symmetric normalization
    a_bin = (x_nodes > 0.5).astype(jnp.float32)
    a_hat = a_bin + eye
    deg = jnp.sum(a_hat, axis=-1)
    dinv = 1.0 / jnp.sqrt(deg)
    adj_norm = a_hat * dinv[:, :, None] * dinv[:, None, :]   # (B, N, N)

    # GNN params (GCNConv-equivalent: x' = A_norm x W + b)
    w1, b1 = linear(keys[1], F, HC)
    w2, b2 = linear(keys[2], HC, HC)

    # input BatchNorms (bn on triu features, bnh on pooled GNN features)
    s_bn, t_bn = bn_affine(keys[3], TRIU)
    s_bnh, t_bnh = bn_affine(keys[4], HC * L)

    # raw MLP params
    mw1, mb1 = linear(keys[5], TRIU + HC * L, HIDDEN)
    s1, t1 = bn_affine(keys[6], HIDDEN)
    mw2, mb2 = linear(keys[7], HIDDEN, HIDDEN // 2)
    s2, t2 = bn_affine(keys[8], HIDDEN // 2)
    mw3, mb3 = linear(keys[9], HIDDEN // 2, HIDDEN // 2)
    s3, t3 = bn_affine(keys[10], HIDDEN // 2, )
    mw4, mb4 = linear(keys[11], HIDDEN // 2, NUM_CLASSES)

    # ---- host-side folding (exact in eval mode) ----
    # first MLP layer sees [x_triu*s_bn+t_bn, hcat*s_bnh+t_bnh]; output goes through (s1, t1):
    #   ((xin*s0+t0) @ W + b) * s1 + t1  ==  xin @ (s0^T * W * s1) + ((t0 @ W + b) * s1 + t1)
    iu0, iu1 = jnp.triu_indices(N, k=1)
    flat_idx = iu0 * N + iu1                                  # strict-upper-triangle row-major positions
    mw1_triu, mw1_h = mw1[:TRIU], mw1[TRIU:]
    w_triu = mw1_triu * s_bn.T * s1                           # (TRIU, HIDDEN)
    w1b = mw1_h * s_bnh.T * s1                                # (L*HC, HIDDEN)
    bm1f = (t_bn @ mw1_triu + t_bnh @ mw1_h + mb1) * s1 + t1  # (1, HIDDEN)
    # scatter the TRIU rows into an (N*N, HIDDEN) matrix so the kernel can use x_flat directly
    w1a = jnp.zeros((N * N, HIDDEN), jnp.float32).at[flat_idx].set(w_triu)
    # fold the remaining eval-mode BNs into their preceding Linear: (xW+b)*s+t == x@(W*s) + (b*s+t)
    wm2f, bm2f = mw2 * s2, mb2 * s2 + t2
    wm3f, bm3f = mw3 * s3, mb3 * s3 + t3
    # lane-dense padding of the classifier: zero weights + -1e9 bias beyond NUM_CLASSES
    wm4p = jnp.zeros((HIDDEN // 2, C_PAD), jnp.float32).at[:, :NUM_CLASSES].set(mw4)
    bm4p = jnp.full((1, C_PAD), -1e9, jnp.float32).at[:, :NUM_CLASSES].set(mb4)

    # per-graph mean-pooling matrix (all graphs have exactly N nodes)
    pool = jnp.kron(jnp.eye(B, dtype=jnp.float32), jnp.ones((1, N), jnp.float32) / N)  # (B, B*N)

    slab = pack_params({
        "w1": w1, "b1": b1, "w2": w2, "b2": b2, "pool": pool,
        "w1a": w1a, "w1b": w1b, "bm1": bm1f,
        "wm2": wm2f, "bm2": bm2f, "wm3": wm3f, "bm3": bm3f,
        "wm4": wm4p, "bm4": bm4p,
    })

    # block-diagonal normalized adjacency + free host-side reshapes (metadata only)
    adj_blk = jax.scipy.linalg.block_diag(*[adj_norm[b] for b in range(B)])  # (B*N, B*N)
    x_stack = x_nodes.reshape(B * N, F)                       # (B*N, F)
    x_flat = x_nodes.reshape(B, N * N)                        # (B, N*N)

    # ---------------- fused forward pass (single pallas_call) ----------------
    out = fused_forward(adj_blk, x_stack, x_flat, slab)       # (B, NUM_CLASSES) log-probs
    out = jax.block_until_ready(out)

    # ---------------- pure-JAX reference check (unfolded path) ----------------
    def ref():
        xw = jnp.einsum("bnf,fh->bnh", x_nodes, w1)
        h1 = jnp.tanh(jnp.einsum("bnm,bmh->bnh", adj_norm, xw) + b1)
        hw = jnp.einsum("bnh,hk->bnk", h1, w2)
        h2 = jnp.tanh(jnp.einsum("bnm,bmh->bnh", adj_norm, hw) + b2)
        hr = jnp.concatenate([h1.mean(axis=1), h2.mean(axis=1)], axis=1)
        x_triu = x_nodes[:, iu0, iu1]
        s0 = jnp.concatenate([s_bn, s_bnh], axis=1)
        t0 = jnp.concatenate([t_bn, t_bnh], axis=1)
        xr = jnp.concatenate([x_triu, hr], axis=1) * s0 + t0
        a = jnp.maximum((xr @ mw1 + mb1) * s1 + t1, 0.0)
        a = jnp.maximum((a @ mw2 + mb2) * s2 + t2, 0.0)
        a = jnp.maximum((a @ mw3 + mb3) * s3 + t3, 0.0)
        lg = a @ mw4 + mb4
        return jax.nn.log_softmax(lg, axis=1)

    np.testing.assert_allclose(np.asarray(out), np.asarray(ref()), rtol=2e-2, atol=2e-2)
    # TODO(synk): train-mode BatchNorm batch statistics and Dropout RNG not implemented (eval-mode forward).
    print("KERNEL_OK")
</pallas_src>

<mosaic_0001>
module attributes {stable_mosaic.version = 11 : i64} {
  func.func @fused_kernel(%arg0: memref<32x32xf32, #tpu.memory_space<vmem>>, %arg1: memref<32x16xf32, #tpu.memory_space<vmem>>, %arg2: memref<2x256xf32, #tpu.memory_space<vmem>>, %arg3: memref<416x128xf32, #tpu.memory_space<vmem>>, %arg4: memref<2x128xf32, #tpu.memory_space<vmem>>) attributes {dimension_semantics = [], scalar_prefetch = 0 : i64, scratch_operands = 0 : i64, tpu.core_type = #tpu.core_type<tc>} {
    %c0 = arith.constant 0 : index
    %c0_0 = arith.constant 0 : index
    %0 = vector.load %arg0[%c0, %c0_0] : memref<32x32xf32, #tpu.memory_space<vmem>>, vector<32x32xf32>
    %c0_1 = arith.constant 0 : index
    %c0_2 = arith.constant 0 : index
    %1 = vector.load %arg1[%c0_1, %c0_2] : memref<32x16xf32, #tpu.memory_space<vmem>>, vector<32x16xf32>
    %c0_3 = arith.constant 0 : index
    %c0_4 = arith.constant 0 : index
    %2 = vector.load %arg3[%c0_3, %c0_4] : memref<416x128xf32, #tpu.memory_space<vmem>>, vector<16x8xf32>
    %cst = arith.constant dense<0.000000e+00> : vector<32x8xf32>
    %3 = tpu.matmul %1, %2, %cst {dimension_numbers = #tpu.dot_dimension_numbers<[1], [0], [0], [1], [0, 0, 1, 1], [], []>} : vector<32x16xf32>, vector<16x8xf32>, vector<32x8xf32> -> vector<32x8xf32>
    %cst_5 = arith.constant dense<0.000000e+00> : vector<32x8xf32>
    %4 = tpu.matmul %0, %3, %cst_5 {dimension_numbers = #tpu.dot_dimension_numbers<[1], [0], [0], [1], [0, 0, 1, 1], [], []>} : vector<32x32xf32>, vector<32x8xf32>, vector<32x8xf32> -> vector<32x8xf32>
    %c16 = arith.constant 16 : index
    %c0_6 = arith.constant 0 : index
    %5 = vector.load %arg3[%c16, %c0_6] : memref<416x128xf32, #tpu.memory_space<vmem>>, vector<1x8xf32>
    %6 = vector.broadcast %5 : vector<1x8xf32> to vector<32x8xf32>
    %7 = arith.addf %4, %6 : vector<32x8xf32>
    %8 = math.tanh %7 : vector<32x8xf32>
    %c24 = arith.constant 24 : index
    %c0_7 = arith.constant 0 : index
    %9 = vector.load %arg3[%c24, %c0_7] : memref<416x128xf32, #tpu.memory_space<vmem>>, vector<8x8xf32>
    %cst_8 = arith.constant dense<0.000000e+00> : vector<32x8xf32>
    %10 = tpu.matmul %8, %9, %cst_8 {dimension_numbers = #tpu.dot_dimension_numbers<[1], [0], [0], [1], [0, 0, 1, 1], [], []>} : vector<32x8xf32>, vector<8x8xf32>, vector<32x8xf32> -> vector<32x8xf32>
    %cst_9 = arith.constant dense<0.000000e+00> : vector<32x8xf32>
    %11 = tpu.matmul %0, %10, %cst_9 {dimension_numbers = #tpu.dot_dimension_numbers<[1], [0], [0], [1], [0, 0, 1, 1], [], []>} : vector<32x32xf32>, vector<32x8xf32>, vector<32x8xf32> -> vector<32x8xf32>
    %c32 = arith.constant 32 : index
    %c0_10 = arith.constant 0 : index
    %12 = vector.load %arg3[%c32, %c0_10] : memref<416x128xf32, #tpu.memory_space<vmem>>, vector<1x8xf32>
    %13 = vector.broadcast %12 : vector<1x8xf32> to vector<32x8xf32>
    %14 = arith.addf %11, %13 : vector<32x8xf32>
    %15 = math.tanh %14 : vector<32x8xf32>
    %c40 = arith.constant 40 : index
    %c0_11 = arith.constant 0 : index
    %16 = vector.load %arg3[%c40, %c0_11] : memref<416x128xf32, #tpu.memory_space<vmem>>, vector<2x32xf32>
    %17 = tpu.concatenate %8, %15 in 1 : vector<32x8xf32>, vector<32x8xf32> -> vector<32x16xf32>
    %cst_12 = arith.constant dense<0.000000e+00> : vector<2x16xf32>
    %18 = tpu.matmul %16, %17, %cst_12 {dimension_numbers = #tpu.dot_dimension_numbers<[1], [0], [0], [1], [0, 0, 1, 1], [], []>} : vector<2x32xf32>, vector<32x16xf32>, vector<2x16xf32> -> vector<2x16xf32>
    %c0_13 = arith.constant 0 : index
    %c0_14 = arith.constant 0 : index
    %19 = vector.load %arg2[%c0_13, %c0_14] : memref<2x256xf32, #tpu.memory_space<vmem>>, vector<2x256xf32>
    %c48 = arith.constant 48 : index
    %c0_15 = arith.constant 0 : index
    %20 = vector.load %arg3[%c48, %c0_15] : memref<416x128xf32, #tpu.memory_space<vmem>>, vector<256x32xf32>
    %cst_16 = arith.constant dense<0.000000e+00> : vector<2x32xf32>
    %21 = tpu.matmul %19, %20, %cst_16 {dimension_numbers = #tpu.dot_dimension_numbers<[1], [0], [0], [1], [0, 0, 1, 1], [], []>} : vector<2x256xf32>, vector<256x32xf32>, vector<2x32xf32> -> vector<2x32xf32>
    %c304 = arith.constant 304 : index
    %c0_17 = arith.constant 0 : index
    %22 = vector.load %arg3[%c304, %c0_17] : memref<416x128xf32, #tpu.memory_space<vmem>>, vector<16x32xf32>
    %cst_18 = arith.constant dense<0.000000e+00> : vector<2x32xf32>
    %23 = tpu.matmul %18, %22, %cst_18 {dimension_numbers = #tpu.dot_dimension_numbers<[1], [0], [0], [1], [0, 0, 1, 1], [], []>} : vector<2x16xf32>, vector<16x32xf32>, vector<2x32xf32> -> vector<2x32xf32>
    %24 = arith.addf %21, %23 : vector<2x32xf32>
    %c320 = arith.constant 320 : index
    %c0_19 = arith.constant 0 : index
    %25 = vector.load %arg3[%c320, %c0_19] : memref<416x128xf32, #tpu.memory_space<vmem>>, vector<1x32xf32>
    %26 = vector.broadcast %25 : vector<1x32xf32> to vector<2x32xf32>
    %27 = arith.addf %24, %26 : vector<2x32xf32>
    %cst_20 = arith.constant 0.000000e+00 : f32
    %28 = vector.broadcast %cst_20 : f32 to vector<2x32xf32>
    %29 = arith.maximumf %27, %28 : vector<2x32xf32>
    %c328 = arith.constant 328 : index
    %c0_21 = arith.constant 0 : index
    %30 = vector.load %arg3[%c328, %c0_21] : memref<416x128xf32, #tpu.memory_space<vmem>>, vector<32x16xf32>
    %cst_22 = arith.constant dense<0.000000e+00> : vector<2x16xf32>
    %31 = tpu.matmul %29, %30, %cst_22 {dimension_numbers = #tpu.dot_dimension_numbers<[1], [0], [0], [1], [0, 0, 1, 1], [], []>} : vector<2x32xf32>, vector<32x16xf32>, vector<2x16xf32> -> vector<2x16xf32>
    %c360 = arith.constant 360 : index
    %c0_23 = arith.constant 0 : index
    %32 = vector.load %arg3[%c360, %c0_23] : memref<416x128xf32, #tpu.memory_space<vmem>>, vector<1x16xf32>
    %33 = vector.broadcast %32 : vector<1x16xf32> to vector<2x16xf32>
    %34 = arith.addf %31, %33 : vector<2x16xf32>
    %cst_24 = arith.constant 0.000000e+00 : f32
    %35 = vector.broadcast %cst_24 : f32 to vector<2x16xf32>
    %36 = arith.maximumf %34, %35 : vector<2x16xf32>
    %c368 = arith.constant 368 : index
    %c0_25 = arith.constant 0 : index
    %37 = vector.load %arg3[%c368, %c0_25] : memref<416x128xf32, #tpu.memory_space<vmem>>, vector<16x16xf32>
    %cst_26 = arith.constant dense<0.000000e+00> : vector<2x16xf32>
    %38 = tpu.matmul %36, %37, %cst_26 {dimension_numbers = #tpu.dot_dimension_numbers<[1], [0], [0], [1], [0, 0, 1, 1], [], []>} : vector<2x16xf32>, vector<16x16xf32>, vector<2x16xf32> -> vector<2x16xf32>
    %c384 = arith.constant 384 : index
    %c0_27 = arith.constant 0 : index
    %39 = vector.load %arg3[%c384, %c0_27] : memref<416x128xf32, #tpu.memory_space<vmem>>, vector<1x16xf32>
    %40 = vector.broadcast %39 : vector<1x16xf32> to vector<2x16xf32>
    %41 = arith.addf %38, %40 : vector<2x16xf32>
    %cst_28 = arith.constant 0.000000e+00 : f32
    %42 = vector.broadcast %cst_28 : f32 to vector<2x16xf32>
    %43 = arith.maximumf %41, %42 : vector<2x16xf32>
    %c392 = arith.constant 392 : index
    %c0_29 = arith.constant 0 : index
    %44 = vector.load %arg3[%c392, %c0_29] : memref<416x128xf32, #tpu.memory_space<vmem>>, vector<16x128xf32>
    %cst_30 = arith.constant dense<0.000000e+00> : vector<2x128xf32>
    %45 = tpu.matmul %43, %44, %cst_30 {dimension_numbers = #tpu.dot_dimension_numbers<[1], [0], [0], [1], [0, 0, 1, 1], [], []>} : vector<2x16xf32>, vector<16x128xf32>, vector<2x128xf32> -> vector<2x128xf32>
    %c408 = arith.constant 408 : index
    %c0_31 = arith.constant 0 : index
    %46 = vector.load %arg3[%c408, %c0_31] : memref<416x128xf32, #tpu.memory_space<vmem>>, vector<1x128xf32>
    %47 = vector.broadcast %46 : vector<1x128xf32> to vector<2x128xf32>
    %48 = arith.addf %45, %47 : vector<2x128xf32>
    %cst_32 = arith.constant dense<0xFF800000> : vector<2xf32>
    %49 = vector.multi_reduction <maximumf>, %48, %cst_32 [1] : vector<2x128xf32> to vector<2xf32>
    %50 = vector.shape_cast %49 : vector<2xf32> to vector<2x1xf32>
    %51 = vector.broadcast %50 : vector<2x1xf32> to vector<2x128xf32>
    %52 = arith.subf %48, %51 : vector<2x128xf32>
    %53 = math.exp %52 : vector<2x128xf32>
    %cst_33 = arith.constant dense<0.000000e+00> : vector<2xf32>
    %54 = vector.multi_reduction <add>, %53, %cst_33 [1] : vector<2x128xf32> to vector<2xf32>
    %55 = vector.shape_cast %54 : vector<2xf32> to vector<2x1xf32>
    %56 = math.log %55 : vector<2x1xf32>
    %57 = vector.broadcast %56 : vector<2x1xf32> to vector<2x128xf32>
    %58 = arith.subf %52, %57 : vector<2x128xf32>
    %c0_34 = arith.constant 0 : index
    %c0_35 = arith.constant 0 : index
    %59 = vector.load %arg4[%c0_34, %c0_35] : memref<2x128xf32, #tpu.memory_space<vmem>>, vector<2x128xf32>
    tpu.vector_store %arg4[%c0_34, %c0_35], %58 {strides = array<i32>} : memref<2x128xf32, #tpu.memory_space<vmem>>, vector<2x128xf32>,
    return
  }
}

</mosaic_0001>

<llo_original>
// kernel: tpu_custom_call.1
$region0: #{tpu_custom_call.1}
  #allocation0 [shape = 'u32[]', space=smem, size = 0x4, offset = 0x4, fixed_abs, tag = 'smem constant byte address 0x4 - core index']
  #allocation1 [shape = 'u32[72,128]{1,0:T(1,128)}', space=vmem, size = 0x9000, scoped, tag = 'internal scratch']
  %s0 = inlined_call_operand.vmem [shape: f32[32,32], index: 0, kind: input, shape index: {}]
  %s1 = inlined_call_operand.vmem [shape: f32[32,16], index: 1, kind: input, shape index: {}]
  %s2 = inlined_call_operand.vmem [shape: f32[2,256], index: 2, kind: input, shape index: {}]
  %s3 = inlined_call_operand.hbm [shape: f32[416,128], index: 3, kind: input, shape index: {}]
  %s4 = inlined_call_operand.hbm [shape: f32[2,128], index: 4, kind: output, shape index: {}]
  %s5 = sld [smem:[#allocation0]]
  $region30: #{tpu_custom_call.1} parent=0
    _
  %s7 = ssub.s32 1, %s5
  %s8 = scalar_select 0, %s7, %s5
  $region1: #{tpu_custom_call.1} parent=0
    #allocation2 [shape = 'u8[212992]{0}', space=vmem, size = 0x34000, scoped, tag = 'input window, operand 3, single buffered']
    #allocation3 [shape = 's32[1]{0}', space=sflag, size = 0x4, scoped, tag = 'scoped memory for tpu_custom_call.1']
    #allocation4 [shape = 's32[1]{0}', space=sflag, size = 0x4, scoped, tag = 'scoped memory for tpu_custom_call.1']
    #allocation5 [shape = 'u8[1024]{0}', space=vmem, size = 0x400, scoped, tag = 'output window, operand 0, single buffered']
    %9 = vsyncpa [#allocation3], 0
    %10 = vsyncpa [#allocation4], 0
    // Predicated region
    $region2: #{tpu_custom_call.1} parent=1 // pred_check
      _
    $region3: #{tpu_custom_call.1} parent=1 // pred_check_branch
      %12 = sbr.rel (0) target = $region5
    $region4: #{tpu_custom_call.1} parent=1 // pred_region
      _
    $region5: #{tpu_custom_call.1} parent=1 // pred_fallthru
      _
    // Predicated region
    $region6: #{tpu_custom_call.1} parent=1 // pred_check
      _
    $region7: #{tpu_custom_call.1} parent=1 // pred_check_branch
      %14 = sbr.rel (0) target = $region9
    $region8: #{tpu_custom_call.1} parent=1 // pred_region
      _
    $region9: #{tpu_custom_call.1} parent=1 // pred_fallthru
      _
    // Predicated region
    $region10: #{tpu_custom_call.1} parent=1 // pred_check
      _
    $region11: #{tpu_custom_call.1} parent=1 // pred_check_branch
      %16 = sbr.rel (0) target = $region13
    $region12: #{tpu_custom_call.1} parent=1 // pred_region
      _
    $region13: #{tpu_custom_call.1} parent=1 // pred_fallthru
      _
    // Predicated region
    $region14: #{tpu_custom_call.1} parent=1 // pred_check
      _
    $region15: #{tpu_custom_call.1} parent=1 // pred_check_branch
      %18 = sbr.rel (0) target = $region17
    $region16: #{tpu_custom_call.1} parent=1 // pred_region
      %20 = vsyncadd [#allocation3], 0
      %s21 = sshll.u32 %s3, 4
      %s22 = int_to_ptr.hbm [resolvable:$true] %s21
      %s23 = sshll.u32 [#allocation2], 4
      %s24 = int_to_ptr.vmem [resolvable:$true] %s23
      %29 = dma.hbm_to_vmem [thread:$0]  %s22, 6656, %s24, [#allocation3], 128, 128, 8
    $region17: #{tpu_custom_call.1} parent=1 // pred_fallthru
      _
    // Predicated region
    $region18: #{tpu_custom_call.1} parent=1 // pred_check
      _
    $region19: #{tpu_custom_call.1} parent=1 // pred_check_branch
      %31 = sbr.rel (0) target = $region21
    $region20: #{tpu_custom_call.1} parent=1 // pred_region
      %33 = dma.done [#allocation3], 6656
    $region21: #{tpu_custom_call.1} parent=1 // pred_fallthru
      _
    %v34 = vld [vmem:[%s0] sm:$0xff]
    %v35 = vld [vmem:[%s0 + $0x8] sm:$0xff]
    %v36 = vld [vmem:[%s0 + $0x10] sm:$0xff]
    %v37 = vld [vmem:[%s0 + $0x18] sm:$0xff]
    %v38 = vld [vmem:[%s1] sm:$0xff]
    %v39 = vld [vmem:[%s1 + $0x8] sm:$0xff]
    %v40 = vld [vmem:[%s1 + $0x10] sm:$0xff]
    %v41 = vld [vmem:[%s1 + $0x18] sm:$0xff]
    %v42 = vld [vmem:[#allocation2] sm:$0xff]
    %v43 = vld [vmem:[#allocation2 + $0x8] sm:$0xff]
    %vm44 = vcmask 130048
    %v46 = vsel %vm44, %v38, 0
    %v49 = vsel %vm44, %v39, 0
    %v52 = vsel %vm44, %v40, 0
    %v55 = vsel %vm44, %v41, 0
    %57 = vmatpush.msra.mxu0 0.0
    %58 = vmatpush.msra.mxu0 0.0
    %59 = vmatpush.msra.mxu0 0.0
    %60 = vmatpush.msra.mxu0 0.0
    %61 = vmatpush.msra.mxu0 0.0
    %62 = vmatpush.msra.mxu0 0.0
    %63 = vmatpush.msra.mxu0 0.0
    %64 = vmatpush.msra.mxu0 0.0
    %65 = vmatpush.msra.mxu0 0.0
    %66 = vmatpush.msra.mxu0 0.0
    %67 = vmatpush.msra.mxu0 0.0
    %68 = vmatpush.msra.mxu0 0.0
    %69 = vmatpush.msra.mxu0 0.0
    %70 = vmatpush.msra.mxu0 0.0
    %71 = vmatpush.msra.mxu0 %v43
    %72 = vmatpush.msra.mxu0 %v42
    %73 = vmatmul.f32.gmra.mxu0 %v46
    %v74 = vpop.f32.mrf.mxu0
    %v75 = vadd.f32 0.0, %v74
    %76 = vmatmul.f32.gmra.mxu0 %v49
    %v77 = vpop.f32.mrf.mxu0
    %v78 = vadd.f32 0.0, %v77
    %79 = vmatmul.f32.gmra.mxu0 %v52
    %v80 = vpop.f32.mrf.mxu0
    %v81 = vadd.f32 0.0, %v80
    %82 = vmatmul.f32.gmra.mxu0 %v55
    %v83 = vpop.f32.mrf.mxu0
    %v84 = vadd.f32 0.0, %v83
    %85 = vdwg.mxu0
    %v86 = vld [vmem:[#allocation2 + $0x10] sm:$0x1]
    %v87 = vperm.slane %v86, 0
    %vm88 = vcmask 261120
    %v90 = vsel %vm88, %v34, 0
    %v93 = vsel %vm88, %v35, 0
    %v96 = vsel %vm88, %v36, 0
    %v99 = vsel %vm88, %v37, 0
    %101 = vmatpush.msra.mxu0 0.0
    %102 = vmatpush.msra.mxu0 0.0
    %103 = vmatpush.msra.mxu0 0.0
    %104 = vmatpush.msra.mxu0 0.0
    %105 = vmatpush.msra.mxu0 0.0
    %106 = vmatpush.msra.mxu0 0.0
    %107 = vmatpush.msra.mxu0 0.0
    %108 = vmatpush.msra.mxu0 0.0
    %109 = vmatpush.msra.mxu0 0.0
    %110 = vmatpush.msra.mxu0 0.0
    %111 = vmatpush.msra.mxu0 0.0
    %112 = vmatpush.msra.mxu0 0.0
    %113 = vmatpush.msra.mxu0 %v84
    %114 = vmatpush.msra.mxu0 %v81
    %115 = vmatpush.msra.mxu0 %v78
    %116 = vmatpush.msra.mxu0 %v75
    %117 = vmatmul.f32.gmra.mxu0 %v90
    %v118 = vpop.f32.mrf.mxu0
    %v119 = vadd.f32 %v87, %v118
    %120 = vmatmul.f32.gmra.mxu0 %v93
    %v121 = vpop.f32.mrf.mxu0
    %v122 = vadd.f32 %v87, %v121
    %123 = vmatmul.f32.gmra.mxu0 %v96
    %v124 = vpop.f32.mrf.mxu0
    %v125 = vadd.f32 %v87, %v124
    %126 = vmatmul.f32.gmra.mxu0 %v99
    %v127 = vpop.f32.mrf.mxu0
    %v128 = vadd.f32 %v87, %v127
    %129 = vdwg.mxu0
    %v130 = vtanh.pop %v119
    %v131 = vtanh.pop %v122
    %v132 = vtanh.pop %v125
    %v133 = vtanh.pop %v128
    %v134 = vld [vmem:[#allocation2 + $0x18] sm:$0xff]
    %vm135 = vcmask 64512
    %v137 = vsel %vm135, %v130, 0
    %v140 = vsel %vm135, %v131, 0
    %v143 = vsel %vm135, %v132, 0
    %v146 = vsel %vm135, %v133, 0
    %148 = vmatpush.msra.mxu0 0.0
    %149 = vmatpush.msra.mxu0 0.0
    %150 = vmatpush.msra.mxu0 0.0
    %151 = vmatpush.msra.mxu0 0.0
    %152 = vmatpush.msra.mxu0 0.0
    %153 = vmatpush.msra.mxu0 0.0
    %154 = vmatpush.msra.mxu0 0.0
    %155 = vmatpush.msra.mxu0 0.0
    %156 = vmatpush.msra.mxu0 0.0
    %157 = vmatpush.msra.mxu0 0.0
    %158 = vmatpush.msra.mxu0 0.0
    %159 = vmatpush.msra.mxu0 0.0
    %160 = vmatpush.msra.mxu0 0.0
    %161 = vmatpush.msra.mxu0 0.0
    %162 = vmatpush.msra.mxu0 0.0
    %163 = vmatpush.msra.mxu0 %v134
    %164 = vmatmul.f32.gmra.mxu0 %v137
    %v165 = vpop.f32.mrf.mxu0
    %v166 = vadd.f32 0.0, %v165
    %167 = vmatmul.f32.gmra.mxu0 %v140
    %v168 = vpop.f32.mrf.mxu0
    %v169 = vadd.f32 0.0, %v168
    %170 = vmatmul.f32.gmra.mxu0 %v143
    %v171 = vpop.f32.mrf.mxu0
    %v172 = vadd.f32 0.0, %v171
    %173 = vmatmul.f32.gmra.mxu0 %v146
    %v174 = vpop.f32.mrf.mxu0
    %v175 = vadd.f32 0.0, %v174
    %176 = vdwg.mxu0
    %v177 = vld [vmem:[#allocation2 + $0x20] sm:$0x1]
    %v178 = vperm.slane %v177, 0
    %179 = vmatpush.msra.mxu0 0.0
    %180 = vmatpush.msra.mxu0 0.0
    %181 = vmatpush.msra.mxu0 0.0
    %182 = vmatpush.msra.mxu0 0.0
    %183 = vmatpush.msra.mxu0 0.0
    %184 = vmatpush.msra.mxu0 0.0
    %185 = vmatpush.msra.mxu0 0.0
    %186 = vmatpush.msra.mxu0 0.0
    %187 = vmatpush.msra.mxu0 0.0
    %188 = vmatpush.msra.mxu0 0.0
    %189 = vmatpush.msra.mxu0 0.0
    %190 = vmatpush.msra.mxu0 0.0
    %191 = vmatpush.msra.mxu0 %v175
    %192 = vmatpush.msra.mxu0 %v172
    %193 = vmatpush.msra.mxu0 %v169
    %194 = vmatpush.msra.mxu0 %v166
    %195 = vmatmul.f32.gmra.mxu0 %v90
    %v196 = vpop.f32.mrf.mxu0
    %v197 = vadd.f32 %v178, %v196
    %198 = vmatmul.f32.gmra.mxu0 %v93
    %v199 = vpop.f32.mrf.mxu0
    %v200 = vadd.f32 %v178, %v199
    %201 = vmatmul.f32.gmra.mxu0 %v96
    %v202 = vpop.f32.mrf.mxu0
    %v203 = vadd.f32 %v178, %v202
    %204 = vmatmul.f32.gmra.mxu0 %v99
    %v205 = vpop.f32.mrf.mxu0
    %v206 = vadd.f32 %v178, %v205
    %207 = vdwg.mxu0
    %v208 = vtanh.pop %v197
    %v209 = vtanh.pop %v200
    %v210 = vtanh.pop %v203
    %v211 = vtanh.pop %v206
    %v212 = vld [vmem:[#allocation2 + $0x28] sm:$0x3]
    %217 = vrot.lane.b32.xlu0 %v208, 8
    %v218 = vpop.permute.xlu0 %217
    %219 = vrot.lane.b32.xlu0 %v209, 8
    %v220 = vpop.permute.xlu0 %219
    %221 = vrot.lane.b32.xlu0 %v210, 8
    %v222 = vpop.permute.xlu0 %221
    %223 = vrot.lane.b32.xlu0 %v211, 8
    %v224 = vpop.permute.xlu0 %223
    %v229 = vsel %vm135, %v130, %v218
    %v230 = vsel %vm135, %v131, %v220
    %v231 = vsel %vm135, %v132, %v222
    %v232 = vsel %vm135, %v133, %v224
    %v234 = vsel %vm88, %v212, 0
    %236 = vmatpush.msra.mxu0 0.0
    %237 = vmatpush.msra.mxu0 0.0
    %238 = vmatpush.msra.mxu0 0.0
    %239 = vmatpush.msra.mxu0 0.0
    %240 = vmatpush.msra.mxu0 0.0
    %241 = vmatpush.msra.mxu0 0.0
    %242 = vmatpush.msra.mxu0 0.0
    %243 = vmatpush.msra.mxu0 0.0
    %244 = vmatpush.msra.mxu0 0.0
    %245 = vmatpush.msra.mxu0 0.0
    %246 = vmatpush.msra.mxu0 0.0
    %247 = vmatpush.msra.mxu0 0.0
    %248 = vmatpush.msra.mxu0 %v232
    %249 = vmatpush.msra.mxu0 %v231
    %250 = vmatpush.msra.mxu0 %v230
    %251 = vmatpush.msra.mxu0 %v229
    %252 = vmatmul.f32.gmra.mxu0 %v234
    %v253 = vpop.f32.mrf.mxu0
    %v254 = vadd.f32 0.0, %v253
    %255 = vdwg.mxu0
    %v256 = vld [vmem:[%s2] sm:$0xf]
    %v257 = vld [vmem:[#allocation2 + $0x30] sm:$0xff]
    %v258 = vld [vmem:[#allocation2 + $0x38] sm:$0xff]
    %v259 = vld [vmem:[#allocation2 + $0x40] sm:$0xff]
    %v260 = vld [vmem:[#allocation2 + $0x48] sm:$0xff]
    %v261 = vld [vmem:[#allocation2 + $0x50] sm:$0xff]
    %v262 = vld [vmem:[#allocation2 + $0x58] sm:$0xff]
    %v263 = vld [vmem:[#allocation2 + $0x60] sm:$0xff]
    %v264 = vld [vmem:[#allocation2 + $0x68] sm:$0xff]
    %v265 = vld [vmem:[#allocation2 + $0x70] sm:$0xff]
    %v266 = vld [vmem:[#allocation2 + $0x78] sm:$0xff]
    %v267 = vld [vmem:[#allocation2 + $0x80] sm:$0xff]
    %v268 = vld [vmem:[#allocation2 + $0x88] sm:$0xff]
    %v269 = vld [vmem:[#allocation2 + $0x90] sm:$0xff]
    %v270 = vld [vmem:[#allocation2 + $0x98] sm:$0xff]
    %v271 = vld [vmem:[#allocation2 + $0xa0] sm:$0xff]
    %v272 = vld [vmem:[#allocation2 + $0xa8] sm:$0xff]
    %v273 = vld [vmem:[#allocation2 + $0xb0] sm:$0xff]
    %v274 = vld [vmem:[#allocation2 + $0xb8] sm:$0xff]
    %v275 = vld [vmem:[#allocation2 + $0xc0] sm:$0xff]
    %v276 = vld [vmem:[#allocation2 + $0xc8] sm:$0xff]
    %v277 = vld [vmem:[#allocation2 + $0xd0] sm:$0xff]
    %v278 = vld [vmem:[#allocation2 + $0xd8] sm:$0xff]
    %v279 = vld [vmem:[#allocation2 + $0xe0] sm:$0xff]
    %v280 = vld [vmem:[#allocation2 + $0xe8] sm:$0xff]
    %v281 = vld [vmem:[#allocation2 + $0xf0] sm:$0xff]
    %v282 = vld [vmem:[#allocation2 + $0xf8] sm:$0xff]
    %v283 = vld [vmem:[#allocation2 + $0x100] sm:$0xff]
    %v284 = vld [vmem:[#allocation2 + $0x108] sm:$0xff]
    %v285 = vld [vmem:[#allocation2 + $0x110] sm:$0xff]
    %v286 = vld [vmem:[#allocation2 + $0x118] sm:$0xff]
    %v287 = vld [vmem:[#allocation2 + $0x120] sm:$0xff]
    %v288 = vld [vmem:[#allocation2 + $0x128] sm:$0xff]
    %v289 = vld [vmem:[#allocation2 + $0x130] sm:$0xff]
    %v290 = vld [vmem:[#allocation2 + $0x138] sm:$0xff]
    %v292 = vsel %vm44, %v254, 0
    %294 = vmatpush.msra.mxu0 0.0
    %295 = vmatpush.msra.mxu0 0.0
    %296 = vmatpush.msra.mxu0 0.0
    %297 = vmatpush.msra.mxu0 0.0
    %298 = vmatpush.msra.mxu0 0.0
    %299 = vmatpush.msra.mxu0 0.0
    %300 = vmatpush.msra.mxu0 0.0
    %301 = vmatpush.msra.mxu0 0.0
    %302 = vmatpush.msra.mxu0 0.0
    %303 = vmatpush.msra.mxu0 0.0
    %304 = vmatpush.msra.mxu0 0.0
    %305 = vmatpush.msra.mxu0 0.0
    %306 = vmatpush.msra.mxu0 0.0
    %307 = vmatpush.msra.mxu0 0.0
    %308 = vmatpush.msra.mxu0 %v290
    %309 = vmatpush.msra.mxu0 %v289
    %310 = vmatmul.f32.gmra.mxu0 %v292
    %v311 = vpop.f32.mrf.mxu0
    %v312 = vadd.f32 0.0, %v311
    %313 = vdwg.mxu0
    %315 = vst [vmem:[#allocation1] ss:$4 sm:$0xff] %v256
    %v316 = vld.sshfl [vmem:[#allocation1] sm:$0xff pattern:$0x73625140]
    %v317 = vld.sshfl [vmem:[#allocation1 + $0x8] sm:$0xff pattern:$0x73625140]
    %320 = vmatpush.msra.mxu0 %v272
    %321 = vmatpush.msra.mxu0 %v271
    %322 = vmatpush.msra.mxu0 %v270
    %323 = vmatpush.msra.mxu0 %v269
    %324 = vmatpush.msra.mxu0 %v268
    %325 = vmatpush.msra.mxu0 %v267
    %326 = vmatpush.msra.mxu0 %v266
    %327 = vmatpush.msra.mxu0 %v265
    %328 = vmatpush.msra.mxu0 %v264
    %329 = vmatpush.msra.mxu0 %v263
    %330 = vmatpush.msra.mxu0 %v262
    %331 = vmatpush.msra.mxu0 %v261
    %332 = vmatpush.msra.mxu0 %v260
    %333 = vmatpush.msra.mxu0 %v259
    %334 = vmatpush.msra.mxu0 %v258
    %335 = vmatpush.msra.mxu0 %v257
    %336 = vmatmul.f32.gmra.mxu0 %v316
    %v337 = vpop.f32.mrf.mxu0
    %v338 = vadd.f32 %v312, %v337
    %339 = vdwg.mxu0
    %340 = vmatpush.msra.mxu0 %v288
    %341 = vmatpush.msra.mxu0 %v287
    %342 = vmatpush.msra.mxu0 %v286
    %343 = vmatpush.msra.mxu0 %v285
    %344 = vmatpush.msra.mxu0 %v284
    %345 = vmatpush.msra.mxu0 %v283
    %346 = vmatpush.msra.mxu0 %v282
    %347 = vmatpush.msra.mxu0 %v281
    %348 = vmatpush.msra.mxu0 %v280
    %349 = vmatpush.msra.mxu0 %v279
    %350 = vmatpush.msra.mxu0 %v278
    %351 = vmatpush.msra.mxu0 %v277
    %352 = vmatpush.msra.mxu0 %v276
    %353 = vmatpush.msra.mxu0 %v275
    %354 = vmatpush.msra.mxu0 %v274
    %355 = vmatpush.msra.mxu0 %v273
    %356 = vmatmul.f32.gmra.mxu0 %v317
    %v357 = vpop.f32.mrf.mxu0
    %v358 = vadd.f32 %v338, %v357
    %359 = vdwg.mxu0
    %v360 = vld [vmem:[#allocation2 + $0x140] sm:$0x1]
    %v361 = vperm.slane %v360, 0
    %v362 = vadd.f32 %v358, %v361
    %v363 = vmax.f32 %v362, 0.0
    %v364 = vld [vmem:[#allocation2 + $0x148] sm:$0xff]
    %v365 = vld [vmem:[#allocation2 + $0x150] sm:$0xff]
    %v366 = vld [vmem:[#allocation2 + $0x158] sm:$0xff]
    %v367 = vld [vmem:[#allocation2 + $0x160] sm:$0xff]
    %v368 = vld [vmem:[#allocation2 + $0x168] sm:$0x1]
    %v369 = vperm.slane %v368, 0
    %v371 = vsel %vm88, %v363, 0
    %373 = vmatpush.msra.mxu0 0.0
    %374 = vmatpush.msra.mxu0 0.0
    %375 = vmatpush.msra.mxu0 0.0
    %376 = vmatpush.msra.mxu0 0.0
    %377 = vmatpush.msra.mxu0 0.0
    %378 = vmatpush.msra.mxu0 0.0
    %379 = vmatpush.msra.mxu0 0.0
    %380 = vmatpush.msra.mxu0 0.0
    %381 = vmatpush.msra.mxu0 0.0
    %382 = vmatpush.msra.mxu0 0.0
    %383 = vmatpush.msra.mxu0 0.0
    %384 = vmatpush.msra.mxu0 0.0
    %385 = vmatpush.msra.mxu0 %v367
    %386 = vmatpush.msra.mxu0 %v366
    %387 = vmatpush.msra.mxu0 %v365
    %388 = vmatpush.msra.mxu0 %v364
    %389 = vmatmul.f32.gmra.mxu0 %v371
    %v390 = vpop.f32.mrf.mxu0
    %v391 = vadd.f32 %v369, %v390
    %392 = vdwg.mxu0
    %v393 = vmax.f32 %v391, 0.0
    %v394 = vld [vmem:[#allocation2 + $0x170] sm:$0xff]
    %v395 = vld [vmem:[#allocation2 + $0x178] sm:$0xff]
    %v396 = vld [vmem:[#allocation2 + $0x180] sm:$0x1]
    %v397 = vperm.slane %v396, 0
    %v399 = vsel %vm44, %v393, 0
    %401 = vmatpush.msra.mxu0 0.0
    %402 = vmatpush.msra.mxu0 0.0
    %403 = vmatpush.msra.mxu0 0.0
    %404 = vmatpush.msra.mxu0 0.0
    %405 = vmatpush.msra.mxu0 0.0
    %406 = vmatpush.msra.mxu0 0.0
    %407 = vmatpush.msra.mxu0 0.0
    %408 = vmatpush.msra.mxu0 0.0
    %409 = vmatpush.msra.mxu0 0.0
    %410 = vmatpush.msra.mxu0 0.0
    %411 = vmatpush.msra.mxu0 0.0
    %412 = vmatpush.msra.mxu0 0.0
    %413 = vmatpush.msra.mxu0 0.0
    %414 = vmatpush.msra.mxu0 0.0
    %415 = vmatpush.msra.mxu0 %v395
    %416 = vmatpush.msra.mxu0 %v394
    %417 = vmatmul.f32.gmra.mxu0 %v399
    %v418 = vpop.f32.mrf.mxu0
    %v419 = vadd.f32 %v397, %v418
    %420 = vdwg.mxu0
    %v421 = vmax.f32 %v419, 0.0
    %v422 = vld [vmem:[#allocation2 + $0x188] sm:$0xff]
    %v423 = vld [vmem:[#allocation2 + $0x190] sm:$0xff]
    %v424 = vld [vmem:[#allocation2 + $0x198] sm:$0x1]
    %v425 = vperm.slane %v424, 0
    %v427 = vsel %vm44, %v421, 0
    %429 = vmatpush.msra.mxu0 0.0
    %430 = vmatpush.msra.mxu0 0.0
    %431 = vmatpush.msra.mxu0 0.0
    %432 = vmatpush.msra.mxu0 0.0
    %433 = vmatpush.msra.mxu0 0.0
    %434 = vmatpush.msra.mxu0 0.0
    %435 = vmatpush.msra.mxu0 0.0
    %436 = vmatpush.msra.mxu0 0.0
    %437 = vmatpush.msra.mxu0 0.0
    %438 = vmatpush.msra.mxu0 0.0
    %439 = vmatpush.msra.mxu0 0.0
    %440 = vmatpush.msra.mxu0 0.0
    %441 = vmatpush.msra.mxu0 0.0
    %442 = vmatpush.msra.mxu0 0.0
    %443 = vmatpush.msra.mxu0 %v423
    %444 = vmatpush.msra.mxu0 %v422
    %445 = vmatmul.f32.gmra.mxu0 %v427
    %v446 = vpop.f32.mrf.mxu0
    %v447 = vadd.f32 %v425, %v446
    %448 = vdwg.mxu0
    %vm449 = vcmask 1041408
    %v450 = vsel %vm449, %v447, -inf
    %451 = vmax.xlane.f32.xlu0 %v450
    %v452 = vpop.xlane.xlu0 %451
    %v453 = vsub.f32 %v447, %v452
    %v454 = vmul.f32 %v453, 1.442695
    %v455 = vpow.pop %v454
    %v456 = vsel %vm449, %v455, 0.0
    %457 = vadd.xlane.f32.xlu0 %v456
    %v458 = vpop.xlane.xlu0 %457
    %v459 = vlog2.pop %v458
    %v460 = vmul.f32 %v459, 0.6931472
    %v461 = vsub.f32 %v453, %v460
    %462 = vst [vmem:[#allocation5] sm:$0x3] %v461
    // Predicated region
    $region22: #{tpu_custom_call.1} parent=1 // pred_check
      _
    $region23: #{tpu_custom_call.1} parent=1 // pred_check_branch
      %464 = sbr.rel (0) target = $region25
    $region24: #{tpu_custom_call.1} parent=1 // pred_region
      %466 = vsyncadd [#allocation4], 0
      %s468 = sshll.u32 [#allocation5], 4
      %s469 = int_to_ptr.vmem [resolvable:$true] %s468
      %s470 = sshll.u32 %s4, 4
      %s471 = int_to_ptr.hbm [resolvable:$true] %s470
      %473 = dma.vmem_to_hbm [thread:$0]  %s469, 32, %s471, [#allocation4]
    $region25: #{tpu_custom_call.1} parent=1 // pred_fallthru
      _
    // Predicated region
    $region26: #{tpu_custom_call.1} parent=1 // pred_check
      _
    $region27: #{tpu_custom_call.1} parent=1 // pred_check_branch
      %475 = sbr.rel (0) target = $region29
    $region28: #{tpu_custom_call.1} parent=1 // pred_region
      %477 = dma.done [#allocation4], 32
    $region29: #{tpu_custom_call.1} parent=1 // pred_fallthru
      _
    %478 = vsyncpa [#allocation3], 1
    %479 = vsyncpa [#allocation4], 1

</llo_original>
